<compile_context>
chip_gen: v5e
topology: v5e:2x2
jax: 0.10.0
libtpu: 0.0.40
codegen_flags: <defaults>
</compile_context>

<pallas_src>
import functools

import jax
import jax.numpy as jnp
from jax.experimental import pallas as pl
from jax.experimental.pallas import tpu as pltpu

RMS_EPS = 1e-6  # Yi / Llama RMSNorm epsilon


def _round_up(x, m):
    return (x + m - 1) // m * m


def _lmhead_kernel(x_ref, g_ref, w_ref, o_ref):
    """Fused RMSNorm + matmul.

    x_ref : (tm, H)  input hidden-state row tile (resident across vocab steps)
    g_ref : (1, H)   RMSNorm gamma (resident)
    w_ref : (H, tv)  lm_head weight vocab tile (streamed)
    o_ref : (tm, tv) logits tile
    """
    # RMSNorm is recomputed every vocab step: no cross-step scratch, so both
    # grid axes are independent ("parallel") and megacore may split the vocab
    # axis. The normalize work hides under the weight DMA / MXU slots.
    x = x_ref[...].astype(jnp.float32)
    var = jnp.mean(x * x, axis=-1, keepdims=True)
    # HF RMSNorm: normalize in f32, cast back to input dtype, scale by gamma.
    xn = (x * jax.lax.rsqrt(var + RMS_EPS)).astype(x_ref.dtype)
    xn = xn * g_ref[...].astype(x_ref.dtype)

    # MXU matmul: compute dtype in, f32 accumulation.
    o_ref[...] = jnp.dot(
        xn, w_ref[...], preferred_element_type=jnp.float32
    ).astype(o_ref.dtype)


def prepare_lm_head_weights(norm_weight, lm_head_weight_t, *, dtype=None,
                            pad_to=1024):
    """One-time (load-time) weight prep: cast to compute dtype and pad the
    vocab dimension to a multiple of `pad_to`.  Do NOT call per forward."""
    if dtype is None:
        dtype = lm_head_weight_t.dtype
    H, V = lm_head_weight_t.shape
    pad_to = max(_round_up(pad_to, 128), 128)
    V_pad = _round_up(max(V, 128), pad_to)
    w = lm_head_weight_t.astype(dtype)
    if V_pad != V:
        w = jnp.pad(w, ((0, 0), (0, V_pad - V)))
    g2d = norm_weight.reshape(1, H).astype(dtype)
    return g2d, w, V


def _auto_tiles():
    """Generation-specific (tm, tv, vmem_limit_bytes) defaults."""
    try:
        kind = jax.devices()[0].device_kind.lower()
    except Exception:
        kind = ""
    if "v7" in kind:
        # 64 MiB VMEM per TC: tm=512 keeps ~MXU-bound per TC without OOM.
        return 512, 1024, 48 * 1024 * 1024
    if "v6" in kind:
        # Needs tm >= ~680 to cross the MXU roofline; 128 MiB VMEM available.
        return 1024, 1024, 96 * 1024 * 1024
    if "v5" in kind:
        return 512, 1024, 96 * 1024 * 1024
    return 512, 512, 48 * 1024 * 1024  # conservative fallback


@functools.partial(jax.jit,
                   static_argnames=("vocab_size", "tm", "tv",
                                    "vmem_limit_bytes"))
def _lm_head_jit(hidden_states, g2d, w_padded, *, vocab_size, tm, tv,
                 vmem_limit_bytes):
    orig_shape = hidden_states.shape
    H = orig_shape[-1]
    dtype = hidden_states.dtype
    itemsize = jnp.dtype(dtype).itemsize

    x2d = hidden_states.reshape(-1, H)
    T = x2d.shape[0]
    V_pad = w_padded.shape[1]
    if V_pad % 128 != 0:
        raise ValueError(
            "lm_head weight vocab dim must be padded to a multiple of 128; "
            "use prepare_lm_head_weights() once at load time.")

    # Row tile aligned to sublane packing; vocab tile to 128 lanes and must
    # divide the (pre-padded) vocab dimension.
    sub = 16 if itemsize <= 2 else 8
    tm_eff = _round_up(min(tm, _round_up(T, sub)), sub)
    T_pad = _round_up(T, tm_eff)
    tv_eff = min(_round_up(tv, 128), V_pad)
    while V_pad % tv_eff:
        tv_eff -= 128

    # Only the (small) activation is ever padded inside the jitted path.
    if T_pad != T:
        x2d = jnp.pad(x2d, ((0, T_pad - T), (0, 0)))

    grid = (T_pad // tm_eff, V_pad // tv_eff)
    n_row_tiles, n_voc_tiles = grid

    cost = pl.CostEstimate(
        flops=2 * T_pad * H * V_pad,
        # Weight is streamed once per ROW tile; activations read once per row
        # tile (block index constant across the vocab axis); logits written once.
        bytes_accessed=n_row_tiles * H * V_pad * itemsize
        + T_pad * H * itemsize
        + T_pad * V_pad * itemsize,
        transcendentals=T_pad * n_voc_tiles,  # rsqrt recomputed per vocab step
    )

    out = pl.pallas_call(
        _lmhead_kernel,
        out_shape=jax.ShapeDtypeStruct((T_pad, V_pad), dtype),
        grid_spec=pltpu.PrefetchScalarGridSpec(
            num_scalar_prefetch=0,
            grid=grid,
            in_specs=[
                pl.BlockSpec((tm_eff, H), lambda i, j: (i, 0)),   # x row tile
                pl.BlockSpec((1, H), lambda i, j: (0, 0)),        # gamma
                pl.BlockSpec((H, tv_eff), lambda i, j: (0, j)),   # weight tile
            ],
            out_specs=pl.BlockSpec((tm_eff, tv_eff), lambda i, j: (i, j)),
        ),
        compiler_params=pltpu.CompilerParams(
            # Both axes independent: row axis AND vocab axis can be sharded
            # across TensorCores (vocab split is the decode win on v7x).
            dimension_semantics=("parallel", "parallel"),
            vmem_limit_bytes=vmem_limit_bytes,
        ),
        cost_estimate=cost,
    )(x2d, g2d, w_padded)

    out = out[:T, :vocab_size]
    return out.reshape(*orig_shape[:-1], vocab_size)


def lm_head(hidden_states, g2d, w_padded, *, vocab_size, tm=None, tv=None,
            vmem_limit_bytes=None):
    """hidden_states: [..., H]; (g2d, w_padded, vocab_size) from
    prepare_lm_head_weights(). Returns logits [..., vocab_size]."""
    a_tm, a_tv, a_vmem = _auto_tiles()
    tm = a_tm if tm is None else tm
    tv = a_tv if tv is None else tv
    vmem_limit_bytes = a_vmem if vmem_limit_bytes is None else vmem_limit_bytes
    return _lm_head_jit(hidden_states, g2d, w_padded, vocab_size=vocab_size,
                        tm=tm, tv=tv, vmem_limit_bytes=vmem_limit_bytes)


def _reference(hidden_states, norm_weight, lm_head_weight_t):
    """Pure-JAX reference matching HF RMSNorm + bf16 matmul (f32 accumulation)."""
    dt = hidden_states.dtype
    x = hidden_states.astype(jnp.float32)
    var = jnp.mean(x * x, axis=-1, keepdims=True)
    xn = (x * jax.lax.rsqrt(var + RMS_EPS)).astype(dt)
    xn = xn * norm_weight.astype(dt)
    logits = jnp.dot(xn, lm_head_weight_t.astype(dt),
                     preferred_element_type=jnp.float32)
    return logits.astype(dt)


if __name__ == "__main__":
    # Small synthetic shapes consistent with the forward: [B, S, H] -> [B, S, V].
    # V deliberately not a multiple of the vocab tile to exercise padding.
    B, S, H, V = 2, 8, 256, 1000
    dtype = jnp.bfloat16

    key = jax.random.PRNGKey(0)
    k1, k2, k3 = jax.random.split(key, 3)

    hidden_states = jax.random.normal(k1, (B, S, H), dtype=jnp.float32).astype(dtype)
    # Deterministic synthetic parameters (no checkpoint load).
    norm_weight = (1.0 + 0.01 * jax.random.normal(k2, (H,), dtype=jnp.float32)).astype(dtype)
    lm_head_weight_t = (0.02 * jax.random.normal(k3, (H, V), dtype=jnp.float32)).astype(dtype)

    # Weight prep happens ONCE (load time), not inside the per-call jit.
    g2d, w_padded, vocab = prepare_lm_head_weights(
        norm_weight, lm_head_weight_t, dtype=dtype)

    logits = lm_head(hidden_states, g2d, w_padded, vocab_size=vocab)
    logits = jax.block_until_ready(logits)

    ref = _reference(hidden_states, norm_weight, lm_head_weight_t)
    assert logits.shape == (B, S, V)
    max_err = float(jnp.max(jnp.abs(logits.astype(jnp.float32) - ref.astype(jnp.float32))))
    assert max_err < 5e-2, f"mismatch vs reference (max abs err = {max_err})"

    print("KERNEL_OK")
</pallas_src>

<mosaic_0001>
module attributes {stable_mosaic.version = 11 : i64} {
  func.func @_lmhead_kernel(%arg0: i32, %arg1: i32, %arg2: memref<16x256xbf16, #tpu.memory_space<vmem>>, %arg3: memref<1x256xbf16, #tpu.memory_space<vmem>>, %arg4: memref<256x512xbf16, #tpu.memory_space<vmem>>, %arg5: memref<16x512xbf16, #tpu.memory_space<vmem>>) attributes {dimension_semantics = [#tpu.dimension_semantics<parallel>, #tpu.dimension_semantics<parallel>], iteration_bounds = array<i64: 1, 2>, scalar_prefetch = 0 : i64, scratch_operands = 0 : i64, tpu.core_type = #tpu.core_type<tc>, window_params = [{transform_indices = @transform_0, window_bounds = array<i64: 16, 256>}, {pipeline_mode = #tpu.pipeline_mode<synchronous>, transform_indices = @transform_1, window_bounds = array<i64: 1, 256>}, {transform_indices = @transform_2, window_bounds = array<i64: 256, 512>}, {transform_indices = @transform_3, window_bounds = array<i64: 16, 512>}]} {
    %c0 = arith.constant 0 : index
    %c0_0 = arith.constant 0 : index
    %0 = vector.load %arg2[%c0, %c0_0] : memref<16x256xbf16, #tpu.memory_space<vmem>>, vector<16x256xbf16>
    %1 = arith.extf %0 : vector<16x256xbf16> to vector<16x256xf32>
    %2 = arith.mulf %1, %1 : vector<16x256xf32>
    %cst = arith.constant dense<0.000000e+00> : vector<16xf32>
    %3 = vector.multi_reduction <add>, %2, %cst [1] : vector<16x256xf32> to vector<16xf32>
    %4 = vector.shape_cast %3 : vector<16xf32> to vector<16x1xf32>
    %cst_1 = arith.constant 2.560000e+02 : f32
    %5 = vector.broadcast %cst_1 : f32 to vector<16x1xf32>
    %6 = arith.divf %4, %5 : vector<16x1xf32>
    %cst_2 = arith.constant 9.99999997E-7 : f32
    %7 = vector.broadcast %cst_2 : f32 to vector<16x1xf32>
    %8 = arith.addf %6, %7 : vector<16x1xf32>
    %9 = math.rsqrt %8 : vector<16x1xf32>
    %10 = vector.broadcast %9 : vector<16x1xf32> to vector<16x256xf32>
    %11 = arith.mulf %1, %10 : vector<16x256xf32>
    %12 = arith.truncf %11 : vector<16x256xf32> to vector<16x256xbf16>
    %c0_3 = arith.constant 0 : index
    %c0_4 = arith.constant 0 : index
    %13 = vector.load %arg3[%c0_3, %c0_4] : memref<1x256xbf16, #tpu.memory_space<vmem>>, vector<1x256xbf16>
    %14 = vector.broadcast %13 : vector<1x256xbf16> to vector<16x256xbf16>
    %15 = arith.mulf %12, %14 : vector<16x256xbf16>
    %c0_5 = arith.constant 0 : index
    %c0_6 = arith.constant 0 : index
    %16 = vector.load %arg4[%c0_5, %c0_6] : memref<256x512xbf16, #tpu.memory_space<vmem>>, vector<256x512xbf16>
    %cst_7 = arith.constant dense<0.000000e+00> : vector<16x512xf32>
    %17 = tpu.matmul %15, %16, %cst_7 {dimension_numbers = #tpu.dot_dimension_numbers<[1], [0], [0], [1], [0, 0, 1, 1], [], []>} : vector<16x256xbf16>, vector<256x512xbf16>, vector<16x512xf32> -> vector<16x512xf32>
    %18 = arith.truncf %17 : vector<16x512xf32> to vector<16x512xbf16>
    %c0_8 = arith.constant 0 : index
    %c0_9 = arith.constant 0 : index
    %19 = vector.load %arg5[%c0_8, %c0_9] : memref<16x512xbf16, #tpu.memory_space<vmem>>, vector<16x512xbf16>
    tpu.vector_store %arg5[%c0_8, %c0_9], %18 {strides = array<i32>} : memref<16x512xbf16, #tpu.memory_space<vmem>>, vector<16x512xbf16>,
    return
  }
  func.func @transform_0(%arg0: i32, %arg1: i32) -> (i32, i32) {
    %c0_i32 = arith.constant 0 : i32
    %c0_i32_0 = arith.constant 0 : i32
    return %arg0, %c0_i32 : i32, i32
  }
  func.func @transform_1(%arg0: i32, %arg1: i32) -> (i32, i32) {
    %c0_i32 = arith.constant 0 : i32
    %c0_i32_0 = arith.constant 0 : i32
    %c0_i32_1 = arith.constant 0 : i32
    return %c0_i32, %c0_i32_0 : i32, i32
  }
  func.func @transform_2(%arg0: i32, %arg1: i32) -> (i32, i32) {
    %c0_i32 = arith.constant 0 : i32
    %c0_i32_0 = arith.constant 0 : i32
    return %c0_i32, %arg1 : i32, i32
  }
  func.func @transform_3(%arg0: i32, %arg1: i32) -> (i32, i32) {
    %c0_i32 = arith.constant 0 : i32
    return %arg0, %arg1 : i32, i32
  }
}

</mosaic_0001>

<llo_original>
// kernel: _lm_head_jit.1
$region0: #{_lm_head_jit.1}
  #allocation0 [shape = 'u32[]', space=smem, size = 0x4, offset = 0x4, fixed_abs, tag = 'smem constant byte address 0x4 - core index']
  #allocation1 [shape = 'u32[72,128]{1,0:T(1,128)}', space=vmem, size = 0x9000, scoped, tag = 'internal scratch']
  %s0 = inlined_call_operand.hbm [shape: bf16[16,256], index: 0, kind: input, shape index: {}]
  %s1 = inlined_call_operand.hbm [shape: bf16[1,256], index: 1, kind: input, shape index: {}]
  %s2 = inlined_call_operand.hbm [shape: bf16[256,1024], index: 2, kind: input, shape index: {}]
  %s3 = inlined_call_operand.vmem [shape: bf16[16,1024], index: 3, kind: output, shape index: {}]
  %s4 = sld [smem:[#allocation0]]
  $region76: #{_lm_head_jit.1} parent=0
    _
  %s6 = ssub.s32 1, %s4
  %s7 = scalar_select 0, %s6, %s4
  $region1: #{_lm_head_jit.1} parent=0
    #allocation2 [shape = 'u8[8192]{0}', space=vmem, size = 0x2000, scoped, tag = 'input window, operand 0, single buffered']
    #allocation3 [shape = 's32[2]{0}', space=sflag, size = 0x8, scoped, tag = 'scoped memory for _lm_head_jit.1']
    #allocation4 [shape = 'u8[1024]{0}', space=vmem, size = 0x400, scoped, tag = 'input window, operand 1, single buffered']
    #allocation5 [shape = 's32[1]{0}', space=sflag, size = 0x4, scoped, tag = 'scoped memory for _lm_head_jit.1']
    #allocation6 [shape = 'u8[524288]{0}', space=vmem, size = 0x80000, scoped, tag = 'input window, operand 2']
    #allocation7 [shape = 'u8[32768]{0}', space=vmem, size = 0x8000, scoped, tag = 'output window, operand 0']
    %8 = vsyncpa [#allocation3], 0
    %9 = vsyncpa [#allocation5], 0
    loop: start=0, step=1, limit=4
    $region2: #{_lm_head_jit.1} parent=1 // loop_pre_header
      _
    $region3: #{_lm_head_jit.1} parent=1 // loop_header
      %s11 = sphi 0, %s15
      %p12 = scmp.ge.s32.totalorder %s11, 4
      %s18 = sphi 0, %s30
      %s19 = sphi 0, %s26
      %s20 = sphi 0, %s18
      %s21 = sphi 0, %s19
      %s22 = sphi 0, %s20
      %s23 = sphi 0, %s21
      %s33 = sphi 0, %s35
      %s36 = sphi 0, %s33
      %s37 = sphi 0, %s36
      %s53 = sphi 0, %s37
      %s57 = sphi 0, %s57
      %s59 = sphi 0, %s57
      %s60 = sphi 0, %s59
      %s74 = sphi 0, %s60
      %s80 = sphi 0, %s82
      %s83 = sphi 0, %s80
      %s84 = sphi 0, %s83
      %s100 = sphi 0, %s84
      %s108 = sphi 0, %s110
      %s111 = sphi 0, %s108
      %s112 = sphi 0, %s111
      %s128 = sphi 0, %s112
    $region4: #{_lm_head_jit.1} parent=1 // loop_header_branch
      %14 = sbr.rel (%p12) target = $region8
    $region5: #{_lm_head_jit.1} parent=1 // loop_body
      %s16 = ssub.s32 %s11, 1
      %s17 = ssub.s32 %s11, 2
      %s24 = sadd.s32 1, %s19
      %p25 = scmp.ge.s32.totalorder %s24, 2
      %s26 = scalar_select %p25, 0, %s24
      %s27 = sadd.s32 1, %s18
      %s28 = scalar_select %p25, %s27, %s18
      %p29 = scmp.ge.s32.totalorder %s28, 1
      %s30 = scalar_select %p29, 0, %s28
      %s31 = ssub.s32 %s18, %s30
      %p32 = scmp.eq.s32.totalorder %s31, 0
      %s34 = sadd.s32 %s33, 1
      %s35 = scalar_select %p32, %s33, %s34
      %p38 = pneg %p32
      %p39 = scmp.eq.s32.totalorder %s11, 1
      %p40 = por %p38, %p39
      %p41 = scmp.ne.s32.totalorder %s33, %s36
      %p42 = scmp.eq.s32.totalorder %s11, 0
      %p43 = por %p41, %p42
      %p44 = scmp.ne.s32.totalorder %s33, %s36
      %p45 = scmp.eq.s32.totalorder %s16, 1
      %p46 = por %p44, %p45
      %p47 = scmp.ne.s32.totalorder %s36, %s37
      %p48 = scmp.eq.s32.totalorder %s16, 0
      %p49 = por %p47, %p48
      %p50 = scmp.ne.s32.totalorder %s36, %s37
      %p51 = scmp.eq.s32.totalorder %s17, 1
      %p52 = por %p50, %p51
      %p54 = scmp.ne.s32.totalorder %s37, %s53
      %p55 = scmp.eq.s32.totalorder %s17, 0
      %p56 = por %p54, %p55
      %s58 = sadd.s32 %s57, 1
      %p61 = scmp.eq.s32.totalorder %s11, 1
      %p62 = scmp.ne.s32.totalorder %s57, %s59
      %p63 = scmp.eq.s32.totalorder %s11, 0
      %p64 = por %p62, %p63
      %p65 = scmp.ne.s32.totalorder %s57, %s59
      %p66 = scmp.eq.s32.totalorder %s16, 1
      %p67 = por %p65, %p66
      %p68 = scmp.ne.s32.totalorder %s59, %s60
      %p69 = scmp.eq.s32.totalorder %s16, 0
      %p70 = por %p68, %p69
      %p71 = scmp.ne.s32.totalorder %s59, %s60
      %p72 = scmp.eq.s32.totalorder %s17, 1
      %p73 = por %p71, %p72
      %p75 = scmp.ne.s32.totalorder %s60, %s74
      %p76 = scmp.eq.s32.totalorder %s17, 0
      %p77 = por %p75, %p76
      %s78 = ssub.s32 %s19, %s26
      %p79 = scmp.eq.s32.totalorder %s78, 0
      %s81 = sadd.s32 %s80, 1
      %s82 = scalar_select %p79, %s80, %s81
      %p85 = pneg %p79
      %p86 = scmp.eq.s32.totalorder %s11, 1
      %p87 = por %p85, %p86
      %p88 = scmp.ne.s32.totalorder %s80, %s83
      %p89 = scmp.eq.s32.totalorder %s11, 0
      %p90 = por %p88, %p89
      %p91 = scmp.ne.s32.totalorder %s80, %s83
      %p92 = scmp.eq.s32.totalorder %s16, 1
      %p93 = por %p91, %p92
      %p94 = scmp.ne.s32.totalorder %s83, %s84
      %p95 = scmp.eq.s32.totalorder %s16, 0
      %p96 = por %p94, %p95
      %p97 = scmp.ne.s32.totalorder %s83, %s84
      %p98 = scmp.eq.s32.totalorder %s17, 1
      %p99 = por %p97, %p98
      %p101 = scmp.ne.s32.totalorder %s84, %s100
      %p102 = scmp.eq.s32.totalorder %s17, 0
      %p103 = por %p101, %p102
      %s104 = ssub.s32 %s18, %s30
      %s105 = ssub.s32 %s19, %s26
      %s106 = sor.u32 %s104, %s105
      %p107 = scmp.eq.s32.totalorder %s106, 0
      %s109 = sadd.s32 %s108, 1
      %s110 = scalar_select %p107, %s108, %s109
      %p113 = pneg %p107
      %p114 = scmp.eq.s32.totalorder %s11, 1
      %p115 = por %p113, %p114
      %p116 = scmp.ne.s32.totalorder %s108, %s111
      %p117 = scmp.eq.s32.totalorder %s11, 0
      %p118 = por %p116, %p117
      %p119 = scmp.ne.s32.totalorder %s108, %s111
      %p120 = scmp.eq.s32.totalorder %s16, 1
      %p121 = por %p119, %p120
      %p122 = scmp.ne.s32.totalorder %s111, %s112
      %p123 = scmp.eq.s32.totalorder %s16, 0
      %p124 = por %p122, %p123
      %p125 = scmp.ne.s32.totalorder %s111, %s112
      %p126 = scmp.eq.s32.totalorder %s17, 1
      %p127 = por %p125, %p126
      %p129 = scmp.ne.s32.totalorder %s112, %s128
      %p130 = scmp.eq.s32.totalorder %s17, 0
      %p131 = por %p129, %p130
      %p132 = scmp.le.s32.totalorder 1, %s11
      %p133 = scmp.lt.s32.totalorder %s11, 3
      %p134 = pnand %p132, %p133
      %p135 = pneg %p134
      // Predicated region
      $region9: #{_lm_head_jit.1} parent=5 // pred_check
        _
      $region10: #{_lm_head_jit.1} parent=5 // pred_check_branch
        %137 = sbr.rel (%p134) target = $region12
      $region11: #{_lm_head_jit.1} parent=5 // pred_region
        %s138 = ssub.s32 %s11, 1
        // Predicated region
        $region13: #{_lm_head_jit.1} parent=11 // pred_check
          %p139 = pneg %p49
        $region14: #{_lm_head_jit.1} parent=11 // pred_check_branch
          %141 = sbr.rel (%p139) target = $region16
        $region15: #{_lm_head_jit.1} parent=11 // pred_region
          %s142 = smul.u32 2, %s20
          %144 = vsyncadd [#allocation3], 0
          %s145 = smul.addr %s142, 2
          %s146 = smul.addr %s145, 4
          %s147 = scalar_lea.hbm %s0, %s146
          %s148 = sshll.u32 %s147, 4
          %s149 = int_to_ptr.hbm [resolvable:$true] %s148
          %s150 = sshll.u32 [#allocation2], 4
          %s151 = int_to_ptr.vmem [resolvable:$true] %s150
          %156 = dma.hbm_to_vmem [thread:$0]  %s149, 256, %s151, [#allocation3], 128, 128, 8
        $region16: #{_lm_head_jit.1} parent=11 // pred_fallthru
          _
        // Predicated region
        $region17: #{_lm_head_jit.1} parent=11 // pred_check
          %p157 = pneg %p70
        $region18: #{_lm_head_jit.1} parent=11 // pred_check_branch
          %159 = sbr.rel (%p157) target = $region20
        $region19: #{_lm_head_jit.1} parent=11 // pred_region
          %161 = vsyncadd [#allocation5], 0
          %s163 = sshll.u32 %s1, 4
          %s164 = int_to_ptr.hbm [resolvable:$true] %s163
          %s165 = sshll.u32 [#allocation4], 4
          %s166 = int_to_ptr.vmem [resolvable:$true] %s165
          %168 = dma.hbm_to_vmem [thread:$0]  %s164, 32, %s166, [#allocation5]
        $region20: #{_lm_head_jit.1} parent=11 // pred_fallthru
          _
      $region12: #{_lm_head_jit.1} parent=5 // pred_fallthru
        _
      %p169 = scmp.lt.s32.totalorder %s11, 2
      // Predicated region
      $region21: #{_lm_head_jit.1} parent=5 // pred_check
        %p170 = pneg %p169
      $region22: #{_lm_head_jit.1} parent=5 // pred_check_branch
        %172 = sbr.rel (%p170) target = $region24
      $region23: #{_lm_head_jit.1} parent=5 // pred_region
        // Predicated region
        $region25: #{_lm_head_jit.1} parent=23 // pred_check
          %p173 = pneg %p90
        $region26: #{_lm_head_jit.1} parent=23 // pred_check_branch
          %175 = sbr.rel (%p173) target = $region28
        $region27: #{_lm_head_jit.1} parent=23 // pred_region
          %s176 = sand.u32 %s11, 1
          %s177 = scalar_lea.sflag [#allocation3], %s176
          %s178 = sand.u32 %s80, 1
          %s179 = smul.addr %s178, 512
          %s180 = scalar_lea.vmem [#allocation6], %s179
          %s181 = smul.u32 4, %s19
          %183 = vsyncadd %s177, 0
          %s184 = smul.addr %s181, 4
          %s185 = scalar_lea.hbm %s2, %s184
          %s186 = sshll.u32 %s185, 4
          %s187 = int_to_ptr.hbm [resolvable:$true] %s186
          %s188 = sshll.u32 %s180, 4
          %s189 = int_to_ptr.vmem [resolvable:$true] %s188
          %194 = dma.hbm_to_vmem [thread:$0]  %s187, 8192, %s189, %s177, 512, 256, 16
        $region28: #{_lm_head_jit.1} parent=23 // pred_fallthru
          _
      $region24: #{_lm_head_jit.1} parent=5 // pred_fallthru
        _
      %p195 = scmp.le.s32.totalorder 1, %s11
      %p196 = scmp.lt.s32.totalorder %s11, 3
      %p197 = pnand %p195, %p196
      %p198 = pneg %p197
      // Predicated region
      $region29: #{_lm_head_jit.1} parent=5 // pred_check
        _
      $region30: #{_lm_head_jit.1} parent=5 // pred_check_branch
        %200 = sbr.rel (%p197) target = $region32
      $region31: #{_lm_head_jit.1} parent=5 // pred_region
        %s201 = ssub.s32 %s11, 1
        // Predicated region
        $region33: #{_lm_head_jit.1} parent=31 // pred_check
          %p202 = pneg %p49
        $region34: #{_lm_head_jit.1} parent=31 // pred_check_branch
          %204 = sbr.rel (%p202) target = $region36
        $region35: #{_lm_head_jit.1} parent=31 // pred_region
          %206 = dma.done [#allocation3], 256
        $region36: #{_lm_head_jit.1} parent=31 // pred_fallthru
          _
        // Predicated region
        $region37: #{_lm_head_jit.1} parent=31 // pred_check
          %p207 = pneg %p70
        $region38: #{_lm_head_jit.1} parent=31 // pred_check_branch
          %209 = sbr.rel (%p207) target = $region40
        $region39: #{_lm_head_jit.1} parent=31 // pred_region
          %211 = dma.done [#allocation5], 32
        $region40: #{_lm_head_jit.1} parent=31 // pred_fallthru
          _
        %s212 = sand.u32 %s16, 1
        %s213 = scalar_lea.sflag [#allocation3], %s212
        %s214 = sand.u32 %s83, 1
        %s215 = smul.addr %s214, 512
        %s216 = scalar_lea.vmem [#allocation6], %s215
        // Predicated region
        $region41: #{_lm_head_jit.1} parent=31 // pred_check
          %p217 = pneg %p96
        $region42: #{_lm_head_jit.1} parent=31 // pred_check_branch
          %219 = sbr.rel (%p217) target = $region44
        $region43: #{_lm_head_jit.1} parent=31 // pred_region
          %221 = dma.done %s213, 8192
        $region44: #{_lm_head_jit.1} parent=31 // pred_fallthru
          _
        %p222 = pneg %p49
        %p223 = pneg %p46
        %p224 = pneg %p70
        %p225 = pneg %p67
        %s226 = sand.u32 %s16, 1
        %s227 = scalar_lea.sflag [#allocation3], %s226
        %s228 = sand.u32 %s83, 1
        %s229 = smul.addr %s228, 512
        %s230 = scalar_lea.vmem [#allocation6], %s229
        %p231 = pneg %p96
        %p232 = pneg %p93
        %p233 = pneg %p124
        %p234 = pneg %p121
        %s235 = sand.u32 %s111, 1
        %s236 = sand.u32 %s111, 1
        %s237 = smul.addr %s236, 32
        %s238 = scalar_lea.vmem [#allocation7], %s237
        %s239 = smul.u32 2, %s20
        %s240 = smul.u32 4, %s21
        %s241 = smul.u32 2, %s20
        %s242 = smul.u32 4, %s21
        %v243 = vld [vmem:[#allocation2] sm:$0xff]
        %v244 = vld [vmem:[#allocation2 + $0x8] sm:$0xff]
        %v245 = vunpack.c.l.bf16 %v243
        %v246 = vunpack.c.h.bf16 %v243
        %v247 = vunpack.c.l.bf16 %v244
        %v248 = vunpack.c.h.bf16 %v244
        %v249 = vmul.f32 %v245, %v245
        %v250 = vmul.f32 %v246, %v246
        %v251 = vmul.f32 %v247, %v247
        %v252 = vmul.f32 %v248, %v248
        %v253 = vadd.f32 %v249, %v250
        %254 = vadd.xlane.f32.xlu0 %v253
        %v255 = vpop.xlane.xlu0 %254
        %v256 = vadd.f32 %v251, %v252
        %257 = vadd.xlane.f32.xlu0 %v256
        %v258 = vpop.xlane.xlu0 %257
        %v259 = vrcp.pop 256.0
        %v260 = vmul.f32 256.0, %v259
        %v261 = vsub.f32 1.0, %v260
        %v262 = vmul.f32 %v259, %v261
        %v263 = vadd.f32 %v259, %v262
        %vm264 = vweird.f32 %v259
        %v265 = vsel %vm264, %v259, %v263
        %v266 = vmul.f32 %v255, %v265
        %v267 = vmul.f32 %v258, %v265
        %v268 = vadd.f32 %v266, 1e-06
        %v269 = vadd.f32 %v267, 1e-06
        %v270 = vrsqrt.pop %v268
        %v271 = vmul.f32 %v270, %v268
        %v272 = vmul.f32 %v271, %v270
        %v273 = vmul.f32 0.5, %v272
        %v274 = vsub.f32 1.5, %v273
        %v275 = vmul.f32 %v270, %v274
        %vm276 = vweird.f32 %v268
        %vm277 = vweird.f32 %v270
        %vm278 = vmor %vm276, %vm277
        %v279 = vsel %vm278, %v270, %v275
        %v280 = vrsqrt.pop %v269
        %v281 = vmul.f32 %v280, %v269
        %v282 = vmul.f32 %v281, %v280
        %v283 = vmul.f32 0.5, %v282
        %v284 = vsub.f32 1.5, %v283
        %v285 = vmul.f32 %v280, %v284
        %vm286 = vweird.f32 %v269
        %vm287 = vweird.f32 %v280
        %vm288 = vmor %vm286, %vm287
        %v289 = vsel %vm288, %v280, %v285
        %v290 = vmul.f32 %v245, %v279
        %v291 = vmul.f32 %v246, %v279
        %v292 = vmul.f32 %v247, %v289
        %v293 = vmul.f32 %v248, %v289
        %v294 = vpack.c.bf16 %v291, %v290
        %v295 = vpack.c.bf16 %v293, %v292
        %v296 = vld [vmem:[#allocation4] sm:$0x3]
        %298 = vst [vmem:[#allocation1] ss:$9 sm:$0xff] %v296
        %v299 = vld [vmem:[#allocation1] sm:$0xff]
        %v300 = vld [vmem:[#allocation1 + $0x9] sm:$0xff]
        %v301 = vpack.i.b16 %v299, %v299
        %v303 = vperm.slane %v301, 0
        %v304 = vpack.i.b16 %v300, %v300
        %v306 = vperm.slane %v304, 0
        %v307 = vunpack.c.l.bf16 %v294
        %v308 = vunpack.c.h.bf16 %v294
        %v309 = vunpack.c.l.bf16 %v295
        %v310 = vunpack.c.h.bf16 %v295
        %v311 = vunpack.c.l.bf16 %v303
        %v312 = vunpack.c.l.bf16 %v306
        %v313 = vmul.f32 %v307, %v311
        %v314 = vmul.f32 %v308, %v312
        %v315 = vmul.f32 %v309, %v311
        %v316 = vmul.f32 %v310, %v312
        %v317 = vpack.c.bf16 %v315, %v313
        %v318 = vpack.c.bf16 %v316, %v314
        %v319 = vld [vmem:[%s216] sm:$0xff]
        %v320 = vld [vmem:[%s216 + $0x8] sm:$0xff]
        %v321 = vld [vmem:[%s216 + $0x10] sm:$0xff]
        %v322 = vld [vmem:[%s216 + $0x18] sm:$0xff]
        %v323 = vld [vmem:[%s216 + $0x20] sm:$0xff]
        %v324 = vld [vmem:[%s216 + $0x28] sm:$0xff]
        %v325 = vld [vmem:[%s216 + $0x30] sm:$0xff]
        %v326 = vld [vmem:[%s216 + $0x38] sm:$0xff]
        %v327 = vld [vmem:[%s216 + $0x40] sm:$0xff]
        %v328 = vld [vmem:[%s216 + $0x48] sm:$0xff]
        %v329 = vld [vmem:[%s216 + $0x50] sm:$0xff]
        %v330 = vld [vmem:[%s216 + $0x58] sm:$0xff]
        %v331 = vld [vmem:[%s216 + $0x60] sm:$0xff]
        %v332 = vld [vmem:[%s216 + $0x68] sm:$0xff]
        %v333 = vld [vmem:[%s216 + $0x70] sm:$0xff]
        %v334 = vld [vmem:[%s216 + $0x78] sm:$0xff]
        %v335 = vld [vmem:[%s216 + $0x80] sm:$0xff]
        %v336 = vld [vmem:[%s216 + $0x88] sm:$0xff]
        %v337 = vld [vmem:[%s216 + $0x90] sm:$0xff]
        %v338 = vld [vmem:[%s216 + $0x98] sm:$0xff]
        %v339 = vld [vmem:[%s216 + $0xa0] sm:$0xff]
        %v340 = vld [vmem:[%s216 + $0xa8] sm:$0xff]
        %v341 = vld [vmem:[%s216 + $0xb0] sm:$0xff]
        %v342 = vld [vmem:[%s216 + $0xb8] sm:$0xff]
        %v343 = vld [vmem:[%s216 + $0xc0] sm:$0xff]
        %v344 = vld [vmem:[%s216 + $0xc8] sm:$0xff]
        %v345 = vld [vmem:[%s216 + $0xd0] sm:$0xff]
        %v346 = vld [vmem:[%s216 + $0xd8] sm:$0xff]
        %v347 = vld [vmem:[%s216 + $0xe0] sm:$0xff]
        %v348 = vld [vmem:[%s216 + $0xe8] sm:$0xff]
        %v349 = vld [vmem:[%s216 + $0xf0] sm:$0xff]
        %v350 = vld [vmem:[%s216 + $0xf8] sm:$0xff]
        %v351 = vld [vmem:[%s216 + $0x100] sm:$0xff]
        %v352 = vld [vmem:[%s216 + $0x108] sm:$0xff]
        %v353 = vld [vmem:[%s216 + $0x110] sm:$0xff]
        %v354 = vld [vmem:[%s216 + $0x118] sm:$0xff]
        %v355 = vld [vmem:[%s216 + $0x120] sm:$0xff]
        %v356 = vld [vmem:[%s216 + $0x128] sm:$0xff]
        %v357 = vld [vmem:[%s216 + $0x130] sm:$0xff]
        %v358 = vld [vmem:[%s216 + $0x138] sm:$0xff]
        %v359 = vld [vmem:[%s216 + $0x140] sm:$0xff]
        %v360 = vld [vmem:[%s216 + $0x148] sm:$0xff]
        %v361 = vld [vmem:[%s216 + $0x150] sm:$0xff]
        %v362 = vld [vmem:[%s216 + $0x158] sm:$0xff]
        %v363 = vld [vmem:[%s216 + $0x160] sm:$0xff]
        %v364 = vld [vmem:[%s216 + $0x168] sm:$0xff]
        %v365 = vld [vmem:[%s216 + $0x170] sm:$0xff]
        %v366 = vld [vmem:[%s216 + $0x178] sm:$0xff]
        %v367 = vld [vmem:[%s216 + $0x180] sm:$0xff]
        %v368 = vld [vmem:[%s216 + $0x188] sm:$0xff]
        %v369 = vld [vmem:[%s216 + $0x190] sm:$0xff]
        %v370 = vld [vmem:[%s216 + $0x198] sm:$0xff]
        %v371 = vld [vmem:[%s216 + $0x1a0] sm:$0xff]
        %v372 = vld [vmem:[%s216 + $0x1a8] sm:$0xff]
        %v373 = vld [vmem:[%s216 + $0x1b0] sm:$0xff]
        %v374 = vld [vmem:[%s216 + $0x1b8] sm:$0xff]
        %v375 = vld [vmem:[%s216 + $0x1c0] sm:$0xff]
        %v376 = vld [vmem:[%s216 + $0x1c8] sm:$0xff]
        %v377 = vld [vmem:[%s216 + $0x1d0] sm:$0xff]
        %v378 = vld [vmem:[%s216 + $0x1d8] sm:$0xff]
        %v379 = vld [vmem:[%s216 + $0x1e0] sm:$0xff]
        %v380 = vld [vmem:[%s216 + $0x1e8] sm:$0xff]
        %v381 = vld [vmem:[%s216 + $0x1f0] sm:$0xff]
        %v382 = vld [vmem:[%s216 + $0x1f8] sm:$0xff]
        %v447 = vunpack.c.l.b16 %v319
        %v448 = vunpack.c.h.b16 %v319
        %v449 = vunpack.c.l.b16 %v320
        %v450 = vunpack.c.h.b16 %v320
        %v451 = vunpack.c.l.b16 %v321
        %v452 = vunpack.c.h.b16 %v321
        %v453 = vunpack.c.l.b16 %v322
        %v454 = vunpack.c.h.b16 %v322
        %v455 = vunpack.c.l.b16 %v323
        %v456 = vunpack.c.h.b16 %v323
        %v457 = vunpack.c.l.b16 %v324
        %v458 = vunpack.c.h.b16 %v324
        %v459 = vunpack.c.l.b16 %v325
        %v460 = vunpack.c.h.b16 %v325
        %v461 = vunpack.c.l.b16 %v326
        %v462 = vunpack.c.h.b16 %v326
        %v463 = vunpack.c.l.b16 %v327
        %v464 = vunpack.c.h.b16 %v327
        %v465 = vunpack.c.l.b16 %v328
        %v466 = vunpack.c.h.b16 %v328
        %v467 = vunpack.c.l.b16 %v329
        %v468 = vunpack.c.h.b16 %v329
        %v469 = vunpack.c.l.b16 %v330
        %v470 = vunpack.c.h.b16 %v330
        %v471 = vunpack.c.l.b16 %v331
        %v472 = vunpack.c.h.b16 %v331
        %v473 = vunpack.c.l.b16 %v332
        %v474 = vunpack.c.h.b16 %v332
        %v475 = vunpack.c.l.b16 %v333
        %v476 = vunpack.c.h.b16 %v333
        %v477 = vunpack.c.l.b16 %v334
        %v478 = vunpack.c.h.b16 %v334
        %v479 = vunpack.c.l.b16 %v335
        %v480 = vunpack.c.h.b16 %v335
        %v481 = vunpack.c.l.b16 %v336
        %v482 = vunpack.c.h.b16 %v336
        %v483 = vunpack.c.l.b16 %v337
        %v484 = vunpack.c.h.b16 %v337
        %v485 = vunpack.c.l.b16 %v338
        %v486 = vunpack.c.h.b16 %v338
        %v487 = vunpack.c.l.b16 %v339
        %v488 = vunpack.c.h.b16 %v339
        %v489 = vunpack.c.l.b16 %v340
        %v490 = vunpack.c.h.b16 %v340
        %v491 = vunpack.c.l.b16 %v341
        %v492 = vunpack.c.h.b16 %v341
        %v493 = vunpack.c.l.b16 %v342
        %v494 = vunpack.c.h.b16 %v342
        %v495 = vunpack.c.l.b16 %v343
        %v496 = vunpack.c.h.b16 %v343
        %v497 = vunpack.c.l.b16 %v344
        %v498 = vunpack.c.h.b16 %v344
        %v499 = vunpack.c.l.b16 %v345
        %v500 = vunpack.c.h.b16 %v345
        %v501 = vunpack.c.l.b16 %v346
        %v502 = vunpack.c.h.b16 %v346
        %v503 = vunpack.c.l.b16 %v347
        %v504 = vunpack.c.h.b16 %v347
        %v505 = vunpack.c.l.b16 %v348
        %v506 = vunpack.c.h.b16 %v348
        %v507 = vunpack.c.l.b16 %v349
        %v508 = vunpack.c.h.b16 %v349
        %v509 = vunpack.c.l.b16 %v350
        %v510 = vunpack.c.h.b16 %v350
        %v511 = vunpack.c.l.b16 %v351
        %v512 = vunpack.c.h.b16 %v351
        %v513 = vunpack.c.l.b16 %v352
        %v514 = vunpack.c.h.b16 %v352
        %v515 = vunpack.c.l.b16 %v353
        %v516 = vunpack.c.h.b16 %v353
        %v517 = vunpack.c.l.b16 %v354
        %v518 = vunpack.c.h.b16 %v354
        %v519 = vunpack.c.l.b16 %v355
        %v520 = vunpack.c.h.b16 %v355
        %v521 = vunpack.c.l.b16 %v356
        %v522 = vunpack.c.h.b16 %v356
        %v523 = vunpack.c.l.b16 %v357
        %v524 = vunpack.c.h.b16 %v357
        %v525 = vunpack.c.l.b16 %v358
        %v526 = vunpack.c.h.b16 %v358
        %v527 = vunpack.c.l.b16 %v359
        %v528 = vunpack.c.h.b16 %v359
        %v529 = vunpack.c.l.b16 %v360
        %v530 = vunpack.c.h.b16 %v360
        %v531 = vunpack.c.l.b16 %v361
        %v532 = vunpack.c.h.b16 %v361
        %v533 = vunpack.c.l.b16 %v362
        %v534 = vunpack.c.h.b16 %v362
        %v535 = vunpack.c.l.b16 %v363
        %v536 = vunpack.c.h.b16 %v363
        %v537 = vunpack.c.l.b16 %v364
        %v538 = vunpack.c.h.b16 %v364
        %v539 = vunpack.c.l.b16 %v365
        %v540 = vunpack.c.h.b16 %v365
        %v541 = vunpack.c.l.b16 %v366
        %v542 = vunpack.c.h.b16 %v366
        %v543 = vunpack.c.l.b16 %v367
        %v544 = vunpack.c.h.b16 %v367
        %v545 = vunpack.c.l.b16 %v368
        %v546 = vunpack.c.h.b16 %v368
        %v547 = vunpack.c.l.b16 %v369
        %v548 = vunpack.c.h.b16 %v369
        %v549 = vunpack.c.l.b16 %v370
        %v550 = vunpack.c.h.b16 %v370
        %v551 = vunpack.c.l.b16 %v371
        %v552 = vunpack.c.h.b16 %v371
        %v553 = vunpack.c.l.b16 %v372
        %v554 = vunpack.c.h.b16 %v372
        %v555 = vunpack.c.l.b16 %v373
        %v556 = vunpack.c.h.b16 %v373
        %v557 = vunpack.c.l.b16 %v374
        %v558 = vunpack.c.h.b16 %v374
        %v559 = vunpack.c.l.b16 %v375
        %v560 = vunpack.c.h.b16 %v375
        %v561 = vunpack.c.l.b16 %v376
        %v562 = vunpack.c.h.b16 %v376
        %v563 = vunpack.c.l.b16 %v377
        %v564 = vunpack.c.h.b16 %v377
        %v565 = vunpack.c.l.b16 %v378
        %v566 = vunpack.c.h.b16 %v378
        %v567 = vunpack.c.l.b16 %v379
        %v568 = vunpack.c.h.b16 %v379
        %v569 = vunpack.c.l.b16 %v380
        %v570 = vunpack.c.h.b16 %v380
        %v571 = vunpack.c.l.b16 %v381
        %v572 = vunpack.c.h.b16 %v381
        %v573 = vunpack.c.l.b16 %v382
        %v574 = vunpack.c.h.b16 %v382
        %v575 = vpack.c.b16 %v451, %v447
        %v576 = vpack.c.b16 %v452, %v448
        %v577 = vpack.c.b16 %v453, %v449
        %v578 = vpack.c.b16 %v454, %v450
        %v579 = vpack.c.b16 %v459, %v455
        %v580 = vpack.c.b16 %v460, %v456
        %v581 = vpack.c.b16 %v461, %v457
        %v582 = vpack.c.b16 %v462, %v458
        %v583 = vpack.c.b16 %v467, %v463
        %v584 = vpack.c.b16 %v468, %v464
        %v585 = vpack.c.b16 %v469, %v465
        %v586 = vpack.c.b16 %v470, %v466
        %v587 = vpack.c.b16 %v475, %v471
        %v588 = vpack.c.b16 %v476, %v472
        %v589 = vpack.c.b16 %v477, %v473
        %v590 = vpack.c.b16 %v478, %v474
        %v591 = vpack.c.b16 %v483, %v479
        %v592 = vpack.c.b16 %v484, %v480
        %v593 = vpack.c.b16 %v485, %v481
        %v594 = vpack.c.b16 %v486, %v482
        %v595 = vpack.c.b16 %v491, %v487
        %v596 = vpack.c.b16 %v492, %v488
        %v597 = vpack.c.b16 %v493, %v489
        %v598 = vpack.c.b16 %v494, %v490
        %v599 = vpack.c.b16 %v499, %v495
        %v600 = vpack.c.b16 %v500, %v496
        %v601 = vpack.c.b16 %v501, %v497
        %v602 = vpack.c.b16 %v502, %v498
        %v603 = vpack.c.b16 %v507, %v503
        %v604 = vpack.c.b16 %v508, %v504
        %v605 = vpack.c.b16 %v509, %v505
        %v606 = vpack.c.b16 %v510, %v506
        %v607 = vpack.c.b16 %v515, %v511
        %v608 = vpack.c.b16 %v516, %v512
        %v609 = vpack.c.b16 %v517, %v513
        %v610 = vpack.c.b16 %v518, %v514
        %v611 = vpack.c.b16 %v523, %v519
        %v612 = vpack.c.b16 %v524, %v520
        %v613 = vpack.c.b16 %v525, %v521
        %v614 = vpack.c.b16 %v526, %v522
        %v615 = vpack.c.b16 %v531, %v527
        %v616 = vpack.c.b16 %v532, %v528
        %v617 = vpack.c.b16 %v533, %v529
        %v618 = vpack.c.b16 %v534, %v530
        %v619 = vpack.c.b16 %v539, %v535
        %v620 = vpack.c.b16 %v540, %v536
        %v621 = vpack.c.b16 %v541, %v537
        %v622 = vpack.c.b16 %v542, %v538
        %v623 = vpack.c.b16 %v547, %v543
        %v624 = vpack.c.b16 %v548, %v544
        %v625 = vpack.c.b16 %v549, %v545
        %v626 = vpack.c.b16 %v550, %v546
        %v627 = vpack.c.b16 %v555, %v551
        %v628 = vpack.c.b16 %v556, %v552
        %v629 = vpack.c.b16 %v557, %v553
        %v630 = vpack.c.b16 %v558, %v554
        %v631 = vpack.c.b16 %v563, %v559
        %v632 = vpack.c.b16 %v564, %v560
        %v633 = vpack.c.b16 %v565, %v561
        %v634 = vpack.c.b16 %v566, %v562
        %v635 = vpack.c.b16 %v571, %v567
        %v636 = vpack.c.b16 %v572, %v568
        %v637 = vpack.c.b16 %v573, %v569
        %v638 = vpack.c.b16 %v574, %v570
        %703 = vmatpush.bf16.msra.mxu0 %v603
        %704 = vmatpush.bf16.msra.mxu0 %v599
        %705 = vmatpush.bf16.msra.mxu0 %v595
        %706 = vmatpush.bf16.msra.mxu0 %v591
        %707 = vmatpush.bf16.msra.mxu0 %v587
        %708 = vmatpush.bf16.msra.mxu0 %v583
        %709 = vmatpush.bf16.msra.mxu0 %v579
        %710 = vmatpush.bf16.msra.mxu0 %v575
        %711 = vmatmul.bf16.gmra.mxu0 %v317
        %v712 = vpop.f32.mrf.mxu0
        %v713 = vadd.f32 0.0, %v712
        %v714 = vpop.f32.mrf.mxu0
        %v715 = vadd.f32 0.0, %v714
        %716 = vdwg.mxu0
        %717 = vmatpush.bf16.msra.mxu0 %v635
        %718 = vmatpush.bf16.msra.mxu0 %v631
        %719 = vmatpush.bf16.msra.mxu0 %v627
        %720 = vmatpush.bf16.msra.mxu0 %v623
        %721 = vmatpush.bf16.msra.mxu0 %v619
        %722 = vmatpush.bf16.msra.mxu0 %v615
        %723 = vmatpush.bf16.msra.mxu0 %v611
        %724 = vmatpush.bf16.msra.mxu0 %v607
        %725 = vmatmul.bf16.gmra.mxu0 %v318
        %v726 = vpop.f32.mrf.mxu0
        %v727 = vadd.f32 %v713, %v726
        %v728 = vpop.f32.mrf.mxu0
        %v729 = vadd.f32 %v715, %v728
        %730 = vdwg.mxu0
        %731 = vmatpush.bf16.msra.mxu0 %v604
        %732 = vmatpush.bf16.msra.mxu0 %v600
        %733 = vmatpush.bf16.msra.mxu0 %v596
        %734 = vmatpush.bf16.msra.mxu0 %v592
        %735 = vmatpush.bf16.msra.mxu0 %v588
        %736 = vmatpush.bf16.msra.mxu0 %v584
        %737 = vmatpush.bf16.msra.mxu0 %v580
        %738 = vmatpush.bf16.msra.mxu0 %v576
        %739 = vmatmul.bf16.gmra.mxu0 %v317
        %v740 = vpop.f32.mrf.mxu0
        %v741 = vadd.f32 0.0, %v740
        %v742 = vpop.f32.mrf.mxu0
        %v743 = vadd.f32 0.0, %v742
        %744 = vdwg.mxu0
        %745 = vmatpush.bf16.msra.mxu0 %v636
        %746 = vmatpush.bf16.msra.mxu0 %v632
        %747 = vmatpush.bf16.msra.mxu0 %v628
        %748 = vmatpush.bf16.msra.mxu0 %v624
        %749 = vmatpush.bf16.msra.mxu0 %v620
        %750 = vmatpush.bf16.msra.mxu0 %v616
        %751 = vmatpush.bf16.msra.mxu0 %v612
        %752 = vmatpush.bf16.msra.mxu0 %v608
        %753 = vmatmul.bf16.gmra.mxu0 %v318
        %v754 = vpop.f32.mrf.mxu0
        %v755 = vadd.f32 %v741, %v754
        %v756 = vpop.f32.mrf.mxu0
        %v757 = vadd.f32 %v743, %v756
        %758 = vdwg.mxu0
        %759 = vmatpush.bf16.msra.mxu0 %v605
        %760 = vmatpush.bf16.msra.mxu0 %v601
        %761 = vmatpush.bf16.msra.mxu0 %v597
        %762 = vmatpush.bf16.msra.mxu0 %v593
        %763 = vmatpush.bf16.msra.mxu0 %v589
        %764 = vmatpush.bf16.msra.mxu0 %v585
        %765 = vmatpush.bf16.msra.mxu0 %v581
        %766 = vmatpush.bf16.msra.mxu0 %v577
        %767 = vmatmul.bf16.gmra.mxu0 %v317
        %v768 = vpop.f32.mrf.mxu0
        %v769 = vadd.f32 0.0, %v768
        %v770 = vpop.f32.mrf.mxu0
        %v771 = vadd.f32 0.0, %v770
        %772 = vdwg.mxu0
        %773 = vmatpush.bf16.msra.mxu0 %v637
        %774 = vmatpush.bf16.msra.mxu0 %v633
        %775 = vmatpush.bf16.msra.mxu0 %v629
        %776 = vmatpush.bf16.msra.mxu0 %v625
        %777 = vmatpush.bf16.msra.mxu0 %v621
        %778 = vmatpush.bf16.msra.mxu0 %v617
        %779 = vmatpush.bf16.msra.mxu0 %v613
        %780 = vmatpush.bf16.msra.mxu0 %v609
        %781 = vmatmul.bf16.gmra.mxu0 %v318
        %v782 = vpop.f32.mrf.mxu0
        %v783 = vadd.f32 %v769, %v782
        %v784 = vpop.f32.mrf.mxu0
        %v785 = vadd.f32 %v771, %v784
        %786 = vdwg.mxu0
        %787 = vmatpush.bf16.msra.mxu0 %v606
        %788 = vmatpush.bf16.msra.mxu0 %v602
        %789 = vmatpush.bf16.msra.mxu0 %v598
        %790 = vmatpush.bf16.msra.mxu0 %v594
        %791 = vmatpush.bf16.msra.mxu0 %v590
        %792 = vmatpush.bf16.msra.mxu0 %v586
        %793 = vmatpush.bf16.msra.mxu0 %v582
        %794 = vmatpush.bf16.msra.mxu0 %v578
        %795 = vmatmul.bf16.gmra.mxu0 %v317
        %v796 = vpop.f32.mrf.mxu0
        %v797 = vadd.f32 0.0, %v796
        %v798 = vpop.f32.mrf.mxu0
        %v799 = vadd.f32 0.0, %v798
        %800 = vdwg.mxu0
        %801 = vmatpush.bf16.msra.mxu0 %v638
        %802 = vmatpush.bf16.msra.mxu0 %v634
        %803 = vmatpush.bf16.msra.mxu0 %v630
        %804 = vmatpush.bf16.msra.mxu0 %v626
        %805 = vmatpush.bf16.msra.mxu0 %v622
        %806 = vmatpush.bf16.msra.mxu0 %v618
        %807 = vmatpush.bf16.msra.mxu0 %v614
        %808 = vmatpush.bf16.msra.mxu0 %v610
        %809 = vmatmul.bf16.gmra.mxu0 %v318
        %v810 = vpop.f32.mrf.mxu0
        %v811 = vadd.f32 %v797, %v810
        %v812 = vpop.f32.mrf.mxu0
        %v813 = vadd.f32 %v799, %v812
        %814 = vdwg.mxu0
        %v815 = vpack.c.bf16 %v755, %v727
        %v816 = vpack.c.bf16 %v811, %v783
        %v817 = vpack.c.bf16 %v757, %v729
        %v818 = vpack.c.bf16 %v813, %v785
        %819 = vst [vmem:[%s238] sm:$0xff] %v815
        %820 = vst [vmem:[%s238 + $0x8] sm:$0xff] %v816
        %821 = vst [vmem:[%s238 + $0x10] sm:$0xff] %v817
        %822 = vst [vmem:[%s238 + $0x18] sm:$0xff] %v818
        %s823 = sand.u32 %s111, 1
        %s824 = sand.u32 %s111, 1
        %s825 = smul.addr %s824, 32
        %s826 = scalar_lea.vmem [#allocation7], %s825
        // Predicated region
        $region45: #{_lm_head_jit.1} parent=31 // pred_check
          %p827 = pneg %p121
        $region46: #{_lm_head_jit.1} parent=31 // pred_check_branch
          %829 = sbr.rel (%p827) target = $region48
        $region47: #{_lm_head_jit.1} parent=31 // pred_region
          %s830 = smul.u32 2, %s20
          %s831 = smul.u32 4, %s21
          %s832 = smul.addr %s830, 8
          %s833 = sadd.s32 %s831, %s832
          %s834 = smul.addr %s833, 4
          %s835 = scalar_lea.vmem %s3, %s834
          // Predicated region
          $region49: #{_lm_head_jit.1} parent=47 // pred_check
            _
          $region50: #{_lm_head_jit.1} parent=47 // pred_check_branch
            %837 = sbr.rel (0) target = $region52
          $region51: #{_lm_head_jit.1} parent=47 // pred_region
            // Predicated region
            $region53: #{_lm_head_jit.1} parent=51 // pred_check
              _
            $region54: #{_lm_head_jit.1} parent=51 // pred_check_branch
              %839 = sbr.rel (0) target = $region56
            $region55: #{_lm_head_jit.1} parent=51 // pred_region
              loop: start=0, step=1, limit=1
              $region57: #{_lm_head_jit.1} parent=55 // loop_pre_header
                _
              $region58: #{_lm_head_jit.1} parent=55 // loop_header
                %s841 = sphi 0, %s845
                %p842 = scmp.ge.s32.totalorder %s841, 1
                %s846 = sphi %s826, %s826
                %s847 = sphi %s835, %s835
              $region59: #{_lm_head_jit.1} parent=55 // loop_header_branch
                %844 = sbr.rel (%p842) target = $region63
              $region60: #{_lm_head_jit.1} parent=55 // loop_body
                %v848 = vld [vmem:[%s846] sm:$0xff]
                %849 = vst [vmem:[%s847] sm:$0xff] %v848
                %v850 = vld [vmem:[%s846 + $0x8] sm:$0xff]
                %851 = vst [vmem:[%s847 + $0x8] sm:$0xff] %v850
                %v852 = vld [vmem:[%s846 + $0x10] sm:$0xff]
                %853 = vst [vmem:[%s847 + $0x20] sm:$0xff] %v852
                %v854 = vld [vmem:[%s846 + $0x18] sm:$0xff]
                %855 = vst [vmem:[%s847 + $0x28] sm:$0xff] %v854
              $region61: #{_lm_head_jit.1} parent=55 // loop_footer
                %s845 = sadd.s32 1, %s841
              $region62: #{_lm_head_jit.1} parent=55 // loop_footer_branch
                %840 = sbr.rel target = $region58
              $region63: #{_lm_head_jit.1} parent=55 // loop_exit
                _
            $region56: #{_lm_head_jit.1} parent=51 // pred_fallthru
              _
            // Predicated region
            $region64: #{_lm_head_jit.1} parent=51 // pred_check
              _
            $region65: #{_lm_head_jit.1} parent=51 // pred_check_branch
              %857 = sbr.rel target = $region67
            $region66: #{_lm_head_jit.1} parent=51 // pred_region
              _
            $region67: #{_lm_head_jit.1} parent=51 // pred_fallthru
              _
          $region52: #{_lm_head_jit.1} parent=47 // pred_fallthru
            _
          %858 = vnop
        $region48: #{_lm_head_jit.1} parent=31 // pred_fallthru
          _
      $region32: #{_lm_head_jit.1} parent=5 // pred_fallthru
        _
      %p859 = scmp.le.s32.totalorder 2, %s11
      // Predicated region
      $region68: #{_lm_head_jit.1} parent=5 // pred_check
        %p860 = pneg %p859
      $region69: #{_lm_head_jit.1} parent=5 // pred_check_branch
        %862 = sbr.rel (%p860) target = $region71
      $region70: #{_lm_head_jit.1} parent=5 // pred_region
        %s863 = ssub.s32 %s11, 2
        // Predicated region
        $region72: #{_lm_head_jit.1} parent=70 // pred_check
          %p864 = pneg %p127
        $region73: #{_lm_head_jit.1} parent=70 // pred_check_branch
          %866 = sbr.rel (%p864) target = $region75
        $region74: #{_lm_head_jit.1} parent=70 // pred_region
          %s867 = sand.u32 %s112, 1
          %s868 = sand.u32 %s112, 1
          %s869 = smul.addr %s868, 32
          %s870 = scalar_lea.vmem [#allocation7], %s869
        $region75: #{_lm_head_jit.1} parent=70 // pred_fallthru
          _
      $region71: #{_lm_head_jit.1} parent=5 // pred_fallthru
        _
    $region6: #{_lm_head_jit.1} parent=1 // loop_footer
      %s15 = sadd.s32 1, %s11
    $region7: #{_lm_head_jit.1} parent=1 // loop_footer_branch
      %10 = sbr.rel target = $region3
    $region8: #{_lm_head_jit.1} parent=1 // loop_exit
      _
    %871 = vsyncpa [#allocation3], 1
    %s872 = scalar_lea.sflag [#allocation3], 1
    %873 = vsyncpa %s872, 1
    %874 = vsyncpa [#allocation5], 1

</llo_original>
